<compile_context>
chip_gen: v7x
topology: tpu7x:2x2x1
jax: 0.10.0
libtpu: 0.0.40
codegen_flags: <defaults>
</compile_context>

<pallas_src>
import jax
import jax.numpy as jnp
from jax.experimental import pallas as pl
from jax.experimental.pallas import tpu as pltpu


def _first_layer_kernel(z_ref, mu_ref, scale_ref, sumlv_ref, fz_ref, sldj_ref):
    """One batch tile: fz = mu + scale * z ; sldj tile = broadcast(sum(logvar))."""
    z = z_ref[...]                                       # (tb, Z)
    fz = mu_ref[...] + scale_ref[...] * z                # VPU, promotes to f32 if needed
    fz_ref[...] = fz.astype(fz_ref.dtype)
    sldj_ref[...] = jnp.broadcast_to(
        sumlv_ref[...], sldj_ref.shape).astype(sldj_ref.dtype)


def first_layer_forward(z, mu, logvar, *, tb=1024, min_pallas_bytes=64 * 1024):
    B, Z = z.shape
    itemsize = jnp.dtype(z.dtype).itemsize

    # Hoisted parameter math: computed once (in f32, independent of z's dtype)
    # so sldj/scale never drift even when z/f_z are bf16.
    mu_f32 = mu.reshape(1, Z).astype(jnp.float32)
    logvar_f32 = logvar.reshape(1, Z).astype(jnp.float32)
    scale_f32 = jnp.exp(logvar_f32)                       # (1, Z)
    sum_lv = jnp.sum(logvar_f32).reshape(1, 1)            # (1, 1)

    # Tiny problems: fixed pallas_call / DMA-setup overhead exceeds the HBM
    # traffic; let XLA fuse the affine with adjacent flow layers instead.
    if B * Z * itemsize < min_pallas_bytes:
        f_z = (mu_f32 + scale_f32 * z).astype(z.dtype)
        sldj = jnp.broadcast_to(sum_lv, (1, B)).astype(z.dtype)
        return f_z, sldj

    # ---- batch tile selection (VMEM-aware, generation-safe) -----------------
    # Pipeline buffers ~ double-buffered z-in + fz-out = 4 * tb * Z * itemsize.
    # Keep them under ~8 MiB (well inside v7x's 64 MiB physical VMEM and the
    # 16/32 MiB default scoped limits on v5e/v6e).
    max_tb_for_vmem = max(128, (8 * 1024 * 1024) // (4 * Z * itemsize))
    tb = max(128, min(tb, max_tb_for_vmem))
    tb = (tb // 128) * 128            # multiple of 128 -> lane-dense (1, tb) sldj tile
    if tb >= B:
        tb = B                        # single full-extent block (exact dims are legal)
    grid = pl.cdiv(B, tb)             # trailing partial block is masked by Pallas

    # Megacore split only pays off when each core gets >= 2 steps to pipeline.
    semantics = ("parallel",) if grid >= 4 else ("arbitrary",)

    pipeline_bytes = 4 * tb * Z * itemsize + 4 * Z * 4 + 4 * tb * itemsize + 4096
    vmem_limit = int(min(32 * 1024 * 1024, max(8 * 1024 * 1024, 4 * pipeline_bytes)))

    cost = pl.CostEstimate(
        flops=2 * B * Z,                                   # mul + add per element
        transcendentals=0,                                 # exp hoisted to wrapper
        bytes_accessed=(2 * B * Z + B) * itemsize + (2 * Z + 1) * 4,
    )

    fz, sldj = pl.pallas_call(
        _first_layer_kernel,
        out_shape=(
            jax.ShapeDtypeStruct((B, Z), z.dtype),         # f_z
            jax.ShapeDtypeStruct((1, B), z.dtype),         # sum_log_abs_det_jacobians row
        ),
        grid=(grid,),
        in_specs=[
            pl.BlockSpec((tb, Z), lambda i: (i, 0)),       # z tile (pipelined)
            pl.BlockSpec((1, Z), lambda i: (0, 0)),        # mu       (resident, f32)
            pl.BlockSpec((1, Z), lambda i: (0, 0)),        # exp(logvar) (resident, f32)
            pl.BlockSpec((1, 1), lambda i: (0, 0)),        # sum(logvar) (resident, f32)
        ],
        out_specs=(
            pl.BlockSpec((tb, Z), lambda i: (i, 0)),       # f_z tile
            pl.BlockSpec((1, tb), lambda i: (0, i)),       # lane-dense sldj slice
        ),
        compiler_params=pltpu.CompilerParams(
            dimension_semantics=semantics,
            vmem_limit_bytes=vmem_limit,
        ),
        cost_estimate=cost,
    )(z, mu_f32, scale_f32, sum_lv)
    return fz, sldj


def reference_forward(z, mu, logvar):
    """Pure-JAX reference mirroring the PyTorch module exactly."""
    f_z = mu + jnp.exp(logvar) * z
    sldj = jnp.sum(logvar) * jnp.ones((1, z.shape[0]), z.dtype)
    return f_z, sldj


if __name__ == "__main__":
    # Small shapes consistent with the module: z is (B, z_size). tb=128 is
    # passed explicitly so the test exercises the multi-step pipelined grid
    # (grid=4, "parallel") while staying small.
    B, Z = 512, 128

    key = jax.random.PRNGKey(0)
    k_z, k_mu, k_lv = jax.random.split(key, 3)

    z = jax.random.normal(k_z, (B, Z), dtype=jnp.float32)
    # PyTorch initializes mu/logvar to zeros; use small random values so the
    # affine math is actually exercised (semantics are identical).
    mu = 0.1 * jax.random.normal(k_mu, (Z,), dtype=jnp.float32)
    logvar = 0.1 * jax.random.normal(k_lv, (Z,), dtype=jnp.float32)

    fz, sldj = first_layer_forward(z, mu, logvar, tb=128)
    fz = jax.block_until_ready(fz)
    sldj = jax.block_until_ready(sldj)

    fz_ref, sldj_ref = reference_forward(z, mu, logvar)
    assert fz.shape == (B, Z)
    assert sldj.shape == (1, B)
    assert jnp.allclose(fz, fz_ref, atol=1e-5, rtol=1e-5), "f_z mismatch"
    assert jnp.allclose(sldj, sldj_ref, atol=1e-5, rtol=1e-5), "sldj mismatch"

    print("KERNEL_OK")
</pallas_src>

<mosaic_0001>
module attributes {stable_mosaic.version = 11 : i64} {
  func.func @_first_layer_kernel(%arg0: i32, %arg1: memref<128x128xf32, #tpu.memory_space<vmem>>, %arg2: memref<1x128xf32, #tpu.memory_space<vmem>>, %arg3: memref<1x128xf32, #tpu.memory_space<vmem>>, %arg4: memref<1x1xf32, #tpu.memory_space<vmem>>, %arg5: memref<128x128xf32, #tpu.memory_space<vmem>>, %arg6: memref<1x128xf32, #tpu.memory_space<vmem>>) attributes {dimension_semantics = [#tpu.dimension_semantics<parallel>], iteration_bounds = array<i64: 4>, scalar_prefetch = 0 : i64, scratch_operands = 0 : i64, tpu.core_type = #tpu.core_type<tc>, window_params = [{transform_indices = @transform_0, window_bounds = array<i64: 128, 128>}, {pipeline_mode = #tpu.pipeline_mode<synchronous>, transform_indices = @transform_1, window_bounds = array<i64: 1, 128>}, {pipeline_mode = #tpu.pipeline_mode<synchronous>, transform_indices = @transform_2, window_bounds = array<i64: 1, 128>}, {pipeline_mode = #tpu.pipeline_mode<synchronous>, transform_indices = @transform_3, window_bounds = array<i64: 1, 1>}, {transform_indices = @transform_4, window_bounds = array<i64: 128, 128>}, {transform_indices = @transform_5, window_bounds = array<i64: 1, 128>}]} {
    %c0 = arith.constant 0 : index
    %c0_0 = arith.constant 0 : index
    %0 = vector.load %arg1[%c0, %c0_0] : memref<128x128xf32, #tpu.memory_space<vmem>>, vector<128x128xf32>
    %c0_1 = arith.constant 0 : index
    %c0_2 = arith.constant 0 : index
    %1 = vector.load %arg2[%c0_1, %c0_2] : memref<1x128xf32, #tpu.memory_space<vmem>>, vector<1x128xf32>
    %c0_3 = arith.constant 0 : index
    %c0_4 = arith.constant 0 : index
    %2 = vector.load %arg3[%c0_3, %c0_4] : memref<1x128xf32, #tpu.memory_space<vmem>>, vector<1x128xf32>
    %3 = vector.broadcast %2 : vector<1x128xf32> to vector<128x128xf32>
    %4 = arith.mulf %3, %0 : vector<128x128xf32>
    %5 = vector.broadcast %1 : vector<1x128xf32> to vector<128x128xf32>
    %6 = arith.addf %5, %4 : vector<128x128xf32>
    %c0_5 = arith.constant 0 : index
    %c0_6 = arith.constant 0 : index
    %7 = vector.load %arg5[%c0_5, %c0_6] : memref<128x128xf32, #tpu.memory_space<vmem>>, vector<128x128xf32>
    tpu.vector_store %arg5[%c0_5, %c0_6], %6 {strides = array<i32>} : memref<128x128xf32, #tpu.memory_space<vmem>>, vector<128x128xf32>,
    %c0_7 = arith.constant 0 : index
    %c0_8 = arith.constant 0 : index
    %8 = vector.load %arg4[%c0_7, %c0_8] : memref<1x1xf32, #tpu.memory_space<vmem>>, vector<1x1xf32>
    %9 = vector.shape_cast %8 : vector<1x1xf32> to vector<1x1xf32>
    %10 = vector.broadcast %9 : vector<1x1xf32> to vector<1x128xf32>
    %c0_9 = arith.constant 0 : index
    %c0_10 = arith.constant 0 : index
    %11 = vector.load %arg6[%c0_9, %c0_10] : memref<1x128xf32, #tpu.memory_space<vmem>>, vector<1x128xf32>
    tpu.vector_store %arg6[%c0_9, %c0_10], %10 {strides = array<i32>} : memref<1x128xf32, #tpu.memory_space<vmem>>, vector<1x128xf32>,
    return
  }
  func.func @transform_0(%arg0: i32) -> (i32, i32) {
    %c0_i32 = arith.constant 0 : i32
    %c0_i32_0 = arith.constant 0 : i32
    return %arg0, %c0_i32 : i32, i32
  }
  func.func @transform_1(%arg0: i32) -> (i32, i32) {
    %c0_i32 = arith.constant 0 : i32
    %c0_i32_0 = arith.constant 0 : i32
    %c0_i32_1 = arith.constant 0 : i32
    return %c0_i32, %c0_i32_0 : i32, i32
  }
  func.func @transform_2(%arg0: i32) -> (i32, i32) {
    %c0_i32 = arith.constant 0 : i32
    %c0_i32_0 = arith.constant 0 : i32
    %c0_i32_1 = arith.constant 0 : i32
    return %c0_i32, %c0_i32_0 : i32, i32
  }
  func.func @transform_3(%arg0: i32) -> (i32, i32) {
    %c0_i32 = arith.constant 0 : i32
    %c0_i32_0 = arith.constant 0 : i32
    %c0_i32_1 = arith.constant 0 : i32
    return %c0_i32, %c0_i32_0 : i32, i32
  }
  func.func @transform_4(%arg0: i32) -> (i32, i32) {
    %c0_i32 = arith.constant 0 : i32
    %c0_i32_0 = arith.constant 0 : i32
    return %arg0, %c0_i32 : i32, i32
  }
  func.func @transform_5(%arg0: i32) -> (i32, i32) {
    %c0_i32 = arith.constant 0 : i32
    %c0_i32_0 = arith.constant 0 : i32
    return %c0_i32, %arg0 : i32, i32
  }
}

</mosaic_0001>

<llo_original>
// kernel: tpu_custom_call.1
$region0: #{tpu_custom_call.1}
  #allocation0 [shape = 'u32[]', space=smem, size = 0x4, offset = 0x4, fixed_abs, tag = 'smem constant byte address 0x4 - core index']
  #allocation1 [shape = 'u32[144,128]{1,0:T(1,128)}', space=vmem, size = 0x12000, scoped, tag = 'internal scratch']
  #allocation2 [shape = 'f32[1,1]{1,0:T(1,128)S(1)}', space=vmem, size = 0x200, scoped, tag = 'scoped memory for tpu_custom_call.1']
  %s0 = inlined_call_operand.hbm [shape: f32[512,128], index: 0, kind: input, shape index: {}]
  %s1 = inlined_call_operand.vmem [shape: f32[1,128], index: 1, kind: input, shape index: {}]
  %s2 = inlined_call_operand.vmem [shape: f32[1,128], index: 2, kind: input, shape index: {}]
  %s3 = inlined_call_operand.<no memory space> [shape: f32[1,1], index: 3, kind: input, shape index: {}]
  %s4 = inlined_call_operand.hbm [shape: f32[512,128], index: 4, kind: output, shape index: {0}]
  %s5 = inlined_call_operand.hbm [shape: f32[1,512], index: 5, kind: output, shape index: {1}]
  %6 = xla_tuple %s4, %s5
  %s7 = sld [smem:[#allocation0]]
  $region61: #{tpu_custom_call.1} parent=0
    _
  %s9 = ssub.s32 1, %s7
  %s10 = scalar_select 0, %s9, %s7
  %v11 = vstv %s3
  %12 = vst [vmem:[#allocation2] sm:$0x1] %v11
  $region1: #{tpu_custom_call.1} parent=0
    #allocation3 [shape = 'u8[131072]{0}', space=vmem, size = 0x20000, scoped, tag = 'input window, operand 0']
    #allocation4 [shape = 's32[2]{0}', space=sflag, size = 0x8, scoped, tag = 'scoped memory for tpu_custom_call.1']
    #allocation5 [shape = 's32[2]{0}', space=sflag, size = 0x8, scoped, tag = 'scoped memory for tpu_custom_call.1']
    #allocation6 [shape = 'u8[131072]{0}', space=vmem, size = 0x20000, scoped, tag = 'output window, operand 0']
    #allocation7 [shape = 'u8[1024]{0}', space=vmem, size = 0x400, scoped, tag = 'output window, operand 1']
    #allocation8 [shape = 's32[2]{0}', space=sflag, size = 0x8, scoped, tag = 'scoped memory for tpu_custom_call.1']
    %13 = vsyncpa [#allocation4], 0
    %s14 = scalar_lea.sflag [#allocation4], 1
    %15 = vsyncpa %s14, 0
    %16 = vsyncpa [#allocation5], 0
    %s17 = scalar_lea.sflag [#allocation5], 1
    %18 = vsyncpa %s17, 0
    %19 = vsyncpa [#allocation8], 0
    %s20 = scalar_lea.sflag [#allocation8], 1
    %21 = vsyncpa %s20, 0
    loop: start=0, step=1, limit=6
    $region2: #{tpu_custom_call.1} parent=1 // loop_pre_header
      _
    $region3: #{tpu_custom_call.1} parent=1 // loop_header
      %s23 = sphi 0, %s27
      %p24 = scmp.ge.s32.totalorder %s23, 6
      %s33 = sphi 0, %s35
      %s36 = sphi 0, %s33
      %s37 = sphi 0, %s36
      %s53 = sphi 0, %s37
      %s57 = sphi 0, %s57
      %s59 = sphi 0, %s57
      %s60 = sphi 0, %s59
      %s74 = sphi 0, %s60
      %s78 = sphi 0, %s78
      %s80 = sphi 0, %s78
      %s81 = sphi 0, %s80
      %s95 = sphi 0, %s81
      %s99 = sphi 0, %s99
      %s101 = sphi 0, %s99
      %s102 = sphi 0, %s101
      %s116 = sphi 0, %s102
      %s122 = sphi 0, %s124
      %s125 = sphi 0, %s122
      %s126 = sphi 0, %s125
      %s142 = sphi 0, %s126
      %s148 = sphi 0, %s150
      %s151 = sphi 0, %s148
      %s152 = sphi 0, %s151
      %s168 = sphi 0, %s152
    $region4: #{tpu_custom_call.1} parent=1 // loop_header_branch
      %26 = sbr.rel (%p24) target = $region8
    $region5: #{tpu_custom_call.1} parent=1 // loop_body
      %s28 = ssub.s32 %s23, 1
      %s29 = ssub.s32 %s23, 2
      %s30 = sadd.s32 %s23, 1
      %s31 = ssub.s32 %s23, %s30
      %p32 = scmp.eq.s32.totalorder %s31, 0
      %s34 = sadd.s32 %s33, 1
      %s35 = scalar_select %p32, %s33, %s34
      %p38 = pneg %p32
      %p39 = scmp.eq.s32.totalorder %s23, 3
      %p40 = por %p38, %p39
      %p41 = scmp.ne.s32.totalorder %s33, %s36
      %p42 = scmp.eq.s32.totalorder %s23, 0
      %p43 = por %p41, %p42
      %p44 = scmp.ne.s32.totalorder %s33, %s36
      %p45 = scmp.eq.s32.totalorder %s28, 3
      %p46 = por %p44, %p45
      %p47 = scmp.ne.s32.totalorder %s36, %s37
      %p48 = scmp.eq.s32.totalorder %s28, 0
      %p49 = por %p47, %p48
      %p50 = scmp.ne.s32.totalorder %s36, %s37
      %p51 = scmp.eq.s32.totalorder %s29, 3
      %p52 = por %p50, %p51
      %p54 = scmp.ne.s32.totalorder %s37, %s53
      %p55 = scmp.eq.s32.totalorder %s29, 0
      %p56 = por %p54, %p55
      %s58 = sadd.s32 %s57, 1
      %p61 = scmp.eq.s32.totalorder %s23, 3
      %p62 = scmp.ne.s32.totalorder %s57, %s59
      %p63 = scmp.eq.s32.totalorder %s23, 0
      %p64 = por %p62, %p63
      %p65 = scmp.ne.s32.totalorder %s57, %s59
      %p66 = scmp.eq.s32.totalorder %s28, 3
      %p67 = por %p65, %p66
      %p68 = scmp.ne.s32.totalorder %s59, %s60
      %p69 = scmp.eq.s32.totalorder %s28, 0
      %p70 = por %p68, %p69
      %p71 = scmp.ne.s32.totalorder %s59, %s60
      %p72 = scmp.eq.s32.totalorder %s29, 3
      %p73 = por %p71, %p72
      %p75 = scmp.ne.s32.totalorder %s60, %s74
      %p76 = scmp.eq.s32.totalorder %s29, 0
      %p77 = por %p75, %p76
      %s79 = sadd.s32 %s78, 1
      %p82 = scmp.eq.s32.totalorder %s23, 3
      %p83 = scmp.ne.s32.totalorder %s78, %s80
      %p84 = scmp.eq.s32.totalorder %s23, 0
      %p85 = por %p83, %p84
      %p86 = scmp.ne.s32.totalorder %s78, %s80
      %p87 = scmp.eq.s32.totalorder %s28, 3
      %p88 = por %p86, %p87
      %p89 = scmp.ne.s32.totalorder %s80, %s81
      %p90 = scmp.eq.s32.totalorder %s28, 0
      %p91 = por %p89, %p90
      %p92 = scmp.ne.s32.totalorder %s80, %s81
      %p93 = scmp.eq.s32.totalorder %s29, 3
      %p94 = por %p92, %p93
      %p96 = scmp.ne.s32.totalorder %s81, %s95
      %p97 = scmp.eq.s32.totalorder %s29, 0
      %p98 = por %p96, %p97
      %s100 = sadd.s32 %s99, 1
      %p103 = scmp.eq.s32.totalorder %s23, 3
      %p104 = scmp.ne.s32.totalorder %s99, %s101
      %p105 = scmp.eq.s32.totalorder %s23, 0
      %p106 = por %p104, %p105
      %p107 = scmp.ne.s32.totalorder %s99, %s101
      %p108 = scmp.eq.s32.totalorder %s28, 3
      %p109 = por %p107, %p108
      %p110 = scmp.ne.s32.totalorder %s101, %s102
      %p111 = scmp.eq.s32.totalorder %s28, 0
      %p112 = por %p110, %p111
      %p113 = scmp.ne.s32.totalorder %s101, %s102
      %p114 = scmp.eq.s32.totalorder %s29, 3
      %p115 = por %p113, %p114
      %p117 = scmp.ne.s32.totalorder %s102, %s116
      %p118 = scmp.eq.s32.totalorder %s29, 0
      %p119 = por %p117, %p118
      %s120 = ssub.s32 %s23, %s30
      %p121 = scmp.eq.s32.totalorder %s120, 0
      %s123 = sadd.s32 %s122, 1
      %s124 = scalar_select %p121, %s122, %s123
      %p127 = pneg %p121
      %p128 = scmp.eq.s32.totalorder %s23, 3
      %p129 = por %p127, %p128
      %p130 = scmp.ne.s32.totalorder %s122, %s125
      %p131 = scmp.eq.s32.totalorder %s23, 0
      %p132 = por %p130, %p131
      %p133 = scmp.ne.s32.totalorder %s122, %s125
      %p134 = scmp.eq.s32.totalorder %s28, 3
      %p135 = por %p133, %p134
      %p136 = scmp.ne.s32.totalorder %s125, %s126
      %p137 = scmp.eq.s32.totalorder %s28, 0
      %p138 = por %p136, %p137
      %p139 = scmp.ne.s32.totalorder %s125, %s126
      %p140 = scmp.eq.s32.totalorder %s29, 3
      %p141 = por %p139, %p140
      %p143 = scmp.ne.s32.totalorder %s126, %s142
      %p144 = scmp.eq.s32.totalorder %s29, 0
      %p145 = por %p143, %p144
      %s146 = ssub.s32 %s23, %s30
      %p147 = scmp.eq.s32.totalorder %s146, 0
      %s149 = sadd.s32 %s148, 1
      %s150 = scalar_select %p147, %s148, %s149
      %p153 = pneg %p147
      %p154 = scmp.eq.s32.totalorder %s23, 3
      %p155 = por %p153, %p154
      %p156 = scmp.ne.s32.totalorder %s148, %s151
      %p157 = scmp.eq.s32.totalorder %s23, 0
      %p158 = por %p156, %p157
      %p159 = scmp.ne.s32.totalorder %s148, %s151
      %p160 = scmp.eq.s32.totalorder %s28, 3
      %p161 = por %p159, %p160
      %p162 = scmp.ne.s32.totalorder %s151, %s152
      %p163 = scmp.eq.s32.totalorder %s28, 0
      %p164 = por %p162, %p163
      %p165 = scmp.ne.s32.totalorder %s151, %s152
      %p166 = scmp.eq.s32.totalorder %s29, 3
      %p167 = por %p165, %p166
      %p169 = scmp.ne.s32.totalorder %s152, %s168
      %p170 = scmp.eq.s32.totalorder %s29, 0
      %p171 = por %p169, %p170
      %p172 = scmp.le.s32.totalorder 1, %s23
      %p173 = scmp.lt.s32.totalorder %s23, 5
      %p174 = pnand %p172, %p173
      %p175 = pneg %p174
      // Predicated region
      $region9: #{tpu_custom_call.1} parent=5 // pred_check
        _
      $region10: #{tpu_custom_call.1} parent=5 // pred_check_branch
        %177 = sbr.rel (%p174) target = $region12
      $region11: #{tpu_custom_call.1} parent=5 // pred_region
        %s178 = ssub.s32 %s23, 1
        // Predicated region
        $region13: #{tpu_custom_call.1} parent=11 // pred_check
          %p179 = pneg %p70
        $region14: #{tpu_custom_call.1} parent=11 // pred_check_branch
          %181 = sbr.rel (%p179) target = $region16
        $region15: #{tpu_custom_call.1} parent=11 // pred_region
          _
        $region16: #{tpu_custom_call.1} parent=11 // pred_fallthru
          _
        // Predicated region
        $region17: #{tpu_custom_call.1} parent=11 // pred_check
          %p182 = pneg %p91
        $region18: #{tpu_custom_call.1} parent=11 // pred_check_branch
          %184 = sbr.rel (%p182) target = $region20
        $region19: #{tpu_custom_call.1} parent=11 // pred_region
          _
        $region20: #{tpu_custom_call.1} parent=11 // pred_fallthru
          _
        // Predicated region
        $region21: #{tpu_custom_call.1} parent=11 // pred_check
          %p185 = pneg %p112
        $region22: #{tpu_custom_call.1} parent=11 // pred_check_branch
          %187 = sbr.rel (%p185) target = $region24
        $region23: #{tpu_custom_call.1} parent=11 // pred_region
          _
        $region24: #{tpu_custom_call.1} parent=11 // pred_fallthru
          _
      $region12: #{tpu_custom_call.1} parent=5 // pred_fallthru
        _
      %p188 = scmp.lt.s32.totalorder %s23, 4
      // Predicated region
      $region25: #{tpu_custom_call.1} parent=5 // pred_check
        %p189 = pneg %p188
      $region26: #{tpu_custom_call.1} parent=5 // pred_check_branch
        %191 = sbr.rel (%p189) target = $region28
      $region27: #{tpu_custom_call.1} parent=5 // pred_region
        // Predicated region
        $region29: #{tpu_custom_call.1} parent=27 // pred_check
          %p192 = pneg %p43
        $region30: #{tpu_custom_call.1} parent=27 // pred_check_branch
          %194 = sbr.rel (%p192) target = $region32
        $region31: #{tpu_custom_call.1} parent=27 // pred_region
          %s195 = sand.u32 %s33, 1
          %s196 = scalar_lea.sflag [#allocation4], %s195
          %s197 = sand.u32 %s33, 1
          %s198 = smul.addr %s197, 128
          %s199 = scalar_lea.vmem [#allocation3], %s198
          %s200 = smul.u32 16, %s23
          %s202 = ssub.s32 2048, 2048
          %203 = vsyncadd %s196, %s202
          %s204 = smul.addr %s200, 128
          %s205 = scalar_lea.hbm %s0, %s204
          %s206 = sshll.u32 %s199, 4
          %s207 = int_to_ptr.vmem [resolvable:$true] %s206
          %212 = dma.hbm_to_vmem [thread:$0]  %s205, 2048, %s207, %s196, 128, 128, 8
        $region32: #{tpu_custom_call.1} parent=27 // pred_fallthru
          _
      $region28: #{tpu_custom_call.1} parent=5 // pred_fallthru
        _
      %p213 = scmp.le.s32.totalorder 1, %s23
      %p214 = scmp.lt.s32.totalorder %s23, 5
      %p215 = pnand %p213, %p214
      %p216 = pneg %p215
      // Predicated region
      $region33: #{tpu_custom_call.1} parent=5 // pred_check
        _
      $region34: #{tpu_custom_call.1} parent=5 // pred_check_branch
        %218 = sbr.rel (%p215) target = $region36
      $region35: #{tpu_custom_call.1} parent=5 // pred_region
        %s219 = ssub.s32 %s23, 1
        %s220 = sand.u32 %s36, 1
        %s221 = scalar_lea.sflag [#allocation4], %s220
        %s222 = sand.u32 %s36, 1
        %s223 = smul.addr %s222, 128
        %s224 = scalar_lea.vmem [#allocation3], %s223
        // Predicated region
        $region37: #{tpu_custom_call.1} parent=35 // pred_check
          %p225 = pneg %p49
        $region38: #{tpu_custom_call.1} parent=35 // pred_check_branch
          %227 = sbr.rel (%p225) target = $region40
        $region39: #{tpu_custom_call.1} parent=35 // pred_region
          %228 = dma.done %s221, 2048
        $region40: #{tpu_custom_call.1} parent=35 // pred_fallthru
          _
        %s229 = sand.u32 %s36, 1
        %s230 = scalar_lea.sflag [#allocation4], %s229
        %s231 = sand.u32 %s36, 1
        %s232 = smul.addr %s231, 128
        %s233 = scalar_lea.vmem [#allocation3], %s232
        %p234 = pneg %p49
        %p235 = pneg %p46
        %p236 = pneg %p70
        %p237 = pneg %p67
        %p238 = pneg %p91
        %p239 = pneg %p88
        %p240 = pneg %p112
        %p241 = pneg %p109
        %p242 = pneg %p138
        %p243 = pneg %p135
        %s244 = sand.u32 %s125, 1
        %s245 = scalar_lea.sflag [#allocation5], %s244
        %s246 = sand.u32 %s125, 1
        %s247 = smul.addr %s246, 128
        %s248 = scalar_lea.vmem [#allocation6], %s247
        %p249 = pneg %p164
        %p250 = pneg %p161
        %s251 = sand.u32 %s151, 1
        %s252 = scalar_lea.sflag [#allocation8], %s251
        %s253 = sand.u32 %s151, 1
        %s254 = scalar_lea.vmem [#allocation7], %s253
        %s255 = smul.u32 16, %s28
        %s256 = smul.u32 16, %s28
        %v257 = vld [vmem:[%s224] sm:$0xff]
        %v258 = vld [vmem:[%s224 + $0x8] sm:$0xff]
        %v259 = vld [vmem:[%s224 + $0x10] sm:$0xff]
        %v260 = vld [vmem:[%s224 + $0x18] sm:$0xff]
        %v261 = vld [vmem:[%s224 + $0x20] sm:$0xff]
        %v262 = vld [vmem:[%s224 + $0x28] sm:$0xff]
        %v263 = vld [vmem:[%s224 + $0x30] sm:$0xff]
        %v264 = vld [vmem:[%s224 + $0x38] sm:$0xff]
        %v265 = vld [vmem:[%s224 + $0x40] sm:$0xff]
        %v266 = vld [vmem:[%s224 + $0x48] sm:$0xff]
        %v267 = vld [vmem:[%s224 + $0x50] sm:$0xff]
        %v268 = vld [vmem:[%s224 + $0x58] sm:$0xff]
        %v269 = vld [vmem:[%s224 + $0x60] sm:$0xff]
        %v270 = vld [vmem:[%s224 + $0x68] sm:$0xff]
        %v271 = vld [vmem:[%s224 + $0x70] sm:$0xff]
        %v272 = vld [vmem:[%s224 + $0x78] sm:$0xff]
        %v273 = vld [vmem:[%s1] sm:$0x1]
        %v274 = vld [vmem:[%s2] sm:$0x1]
        %v276 = vlaneseq
        %v277 = vshrl.u32 %v276, 7
        %v278 = vsub.s32 0, %v277
        %v279 = vrot.slane %v274, %v278
        %v281 = vmul.f32 %v279, %v257
        %v282 = vmul.f32 %v279, %v258
        %v283 = vmul.f32 %v279, %v259
        %v284 = vmul.f32 %v279, %v260
        %v285 = vmul.f32 %v279, %v261
        %v286 = vmul.f32 %v279, %v262
        %v287 = vmul.f32 %v279, %v263
        %v288 = vmul.f32 %v279, %v264
        %v289 = vmul.f32 %v279, %v265
        %v290 = vmul.f32 %v279, %v266
        %v291 = vmul.f32 %v279, %v267
        %v292 = vmul.f32 %v279, %v268
        %v293 = vmul.f32 %v279, %v269
        %v294 = vmul.f32 %v279, %v270
        %v295 = vmul.f32 %v279, %v271
        %v296 = vmul.f32 %v279, %v272
        %v298 = vlaneseq
        %v299 = vshrl.u32 %v298, 7
        %v300 = vsub.s32 0, %v299
        %v301 = vrot.slane %v273, %v300
        %v303 = vadd.f32 %v301, %v281
        %v304 = vadd.f32 %v301, %v282
        %v305 = vadd.f32 %v301, %v283
        %v306 = vadd.f32 %v301, %v284
        %v307 = vadd.f32 %v301, %v285
        %v308 = vadd.f32 %v301, %v286
        %v309 = vadd.f32 %v301, %v287
        %v310 = vadd.f32 %v301, %v288
        %v311 = vadd.f32 %v301, %v289
        %v312 = vadd.f32 %v301, %v290
        %v313 = vadd.f32 %v301, %v291
        %v314 = vadd.f32 %v301, %v292
        %v315 = vadd.f32 %v301, %v293
        %v316 = vadd.f32 %v301, %v294
        %v317 = vadd.f32 %v301, %v295
        %v318 = vadd.f32 %v301, %v296
        %319 = vst [vmem:[%s248] sm:$0xff] %v303
        %320 = vst [vmem:[%s248 + $0x8] sm:$0xff] %v304
        %321 = vst [vmem:[%s248 + $0x10] sm:$0xff] %v305
        %322 = vst [vmem:[%s248 + $0x18] sm:$0xff] %v306
        %323 = vst [vmem:[%s248 + $0x20] sm:$0xff] %v307
        %324 = vst [vmem:[%s248 + $0x28] sm:$0xff] %v308
        %325 = vst [vmem:[%s248 + $0x30] sm:$0xff] %v309
        %326 = vst [vmem:[%s248 + $0x38] sm:$0xff] %v310
        %327 = vst [vmem:[%s248 + $0x40] sm:$0xff] %v311
        %328 = vst [vmem:[%s248 + $0x48] sm:$0xff] %v312
        %329 = vst [vmem:[%s248 + $0x50] sm:$0xff] %v313
        %330 = vst [vmem:[%s248 + $0x58] sm:$0xff] %v314
        %331 = vst [vmem:[%s248 + $0x60] sm:$0xff] %v315
        %332 = vst [vmem:[%s248 + $0x68] sm:$0xff] %v316
        %333 = vst [vmem:[%s248 + $0x70] sm:$0xff] %v317
        %334 = vst [vmem:[%s248 + $0x78] sm:$0xff] %v318
        %v335 = vld [vmem:[#allocation2] sm:$0x1]
        %337 = vset.pattern.permute.xlu0 0
        %338 = vperm.xlu0 %337, %v335
        %v339 = vpop.permute.xlu0 %338
        %v341 = vlaneseq
        %v342 = vshrl.u32 %v341, 7
        %v343 = vsub.s32 0, %v342
        %v344 = vrot.slane %v339, %v343
        %345 = vst [vmem:[%s254] sm:$0x1] %v344
        %s346 = sand.u32 %s125, 1
        %s347 = scalar_lea.sflag [#allocation5], %s346
        %s348 = sand.u32 %s125, 1
        %s349 = smul.addr %s348, 128
        %s350 = scalar_lea.vmem [#allocation6], %s349
        %s351 = sand.u32 %s151, 1
        %s352 = scalar_lea.sflag [#allocation8], %s351
        %s353 = sand.u32 %s151, 1
        %s354 = scalar_lea.vmem [#allocation7], %s353
        // Predicated region
        $region41: #{tpu_custom_call.1} parent=35 // pred_check
          %p355 = pneg %p135
        $region42: #{tpu_custom_call.1} parent=35 // pred_check_branch
          %357 = sbr.rel (%p355) target = $region44
        $region43: #{tpu_custom_call.1} parent=35 // pred_region
          %s358 = smul.u32 16, %s28
          %s360 = ssub.s32 2048, 2048
          %361 = vsyncadd %s347, %s360
          %s362 = smul.addr %s358, 128
          %s363 = scalar_lea.hbm %s4, %s362
          %s364 = sshll.u32 %s350, 4
          %s365 = int_to_ptr.vmem [resolvable:$true] %s364
          %370 = dma.vmem_to_hbm [thread:$0]  %s365, 2048, %s363, %s347, 128, 128, 8
        $region44: #{tpu_custom_call.1} parent=35 // pred_fallthru
          _
        // Predicated region
        $region45: #{tpu_custom_call.1} parent=35 // pred_check
          %p371 = pneg %p161
        $region46: #{tpu_custom_call.1} parent=35 // pred_check_branch
          %373 = sbr.rel (%p371) target = $region48
        $region47: #{tpu_custom_call.1} parent=35 // pred_region
          %s375 = ssub.s32 16, 16
          %376 = vsyncadd %s352, %s375
          %s377 = smul.addr %s28, 16
          %s378 = scalar_lea.hbm %s5, %s377
          %s380 = sshll.u32 %s354, 4
          %s381 = int_to_ptr.vmem [resolvable:$true] %s380
          %383 = dma.vmem_to_hbm [thread:$0]  %s381, 16, %s378, %s352
        $region48: #{tpu_custom_call.1} parent=35 // pred_fallthru
          _
      $region36: #{tpu_custom_call.1} parent=5 // pred_fallthru
        _
      %p384 = scmp.le.s32.totalorder 2, %s23
      // Predicated region
      $region49: #{tpu_custom_call.1} parent=5 // pred_check
        %p385 = pneg %p384
      $region50: #{tpu_custom_call.1} parent=5 // pred_check_branch
        %387 = sbr.rel (%p385) target = $region52
      $region51: #{tpu_custom_call.1} parent=5 // pred_region
        %s388 = ssub.s32 %s23, 2
        // Predicated region
        $region53: #{tpu_custom_call.1} parent=51 // pred_check
          %p389 = pneg %p141
        $region54: #{tpu_custom_call.1} parent=51 // pred_check_branch
          %391 = sbr.rel (%p389) target = $region56
        $region55: #{tpu_custom_call.1} parent=51 // pred_region
          %s392 = sand.u32 %s126, 1
          %s393 = scalar_lea.sflag [#allocation5], %s392
          %s394 = sand.u32 %s126, 1
          %s395 = smul.addr %s394, 128
          %s396 = scalar_lea.vmem [#allocation6], %s395
          %397 = dma.done %s393, 2048
        $region56: #{tpu_custom_call.1} parent=51 // pred_fallthru
          _
        // Predicated region
        $region57: #{tpu_custom_call.1} parent=51 // pred_check
          %p398 = pneg %p167
        $region58: #{tpu_custom_call.1} parent=51 // pred_check_branch
          %400 = sbr.rel (%p398) target = $region60
        $region59: #{tpu_custom_call.1} parent=51 // pred_region
          %s401 = sand.u32 %s152, 1
          %s402 = scalar_lea.sflag [#allocation8], %s401
          %s403 = sand.u32 %s152, 1
          %s404 = scalar_lea.vmem [#allocation7], %s403
          %405 = dma.done %s402, 16
        $region60: #{tpu_custom_call.1} parent=51 // pred_fallthru
          _
      $region52: #{tpu_custom_call.1} parent=5 // pred_fallthru
        _
    $region6: #{tpu_custom_call.1} parent=1 // loop_footer
      %s27 = sadd.s32 1, %s23
    $region7: #{tpu_custom_call.1} parent=1 // loop_footer_branch
      %22 = sbr.rel target = $region3
    $region8: #{tpu_custom_call.1} parent=1 // loop_exit
      _
    %406 = vsyncpa [#allocation4], 1
    %s407 = scalar_lea.sflag [#allocation4], 1
    %408 = vsyncpa %s407, 1
    %409 = vsyncpa [#allocation5], 1
    %s410 = scalar_lea.sflag [#allocation5], 1
    %411 = vsyncpa %s410, 1
    %412 = vsyncpa [#allocation8], 1
    %s413 = scalar_lea.sflag [#allocation8], 1
    %414 = vsyncpa %s413, 1

</llo_original>
